<compile_context>
chip_gen: v7x
topology: tpu7x:2x2x1
jax: 0.10.0
libtpu: 0.0.40
codegen_flags: <defaults>
</compile_context>

<pallas_src>
import functools
import math

import jax
import jax.numpy as jnp
from jax.experimental import pallas as pl
from jax.experimental.pallas import tpu as pltpu


def _gaussian_fwd_kernel(half_inv_ndim, eps_ref, mu_ref, std_ref,
                         sample_ref, msum_ref):
    """One grid step == TB independent GaussianModel.forward() passes.

    eps_ref    : (TB, ndim) f32   standard-normal draws
    mu_ref     : (1,  ndim) f32   model mean (resident across the grid)
    std_ref    : (1,  ndim) f32   model std  (resident across the grid)
    sample_ref : (TB, ndim) f32   x = mu + std * eps
    msum_ref   : (TB,)      f32   -(0.5/ndim) * sum(eps^2)  (eps-dependent part
                                  of mean log_prob; constant added in wrapper)
    """
    eps = eps_ref[...]
    sample_ref[...] = mu_ref[...] + std_ref[...] * eps
    msum_ref[...] = (-half_inv_ndim) * jnp.sum(eps * eps, axis=-1)


def gaussian_model_forward_batched(mu, std, eps, *, tb=None):
    """B independent GaussianModel.forward() passes in one pallas_call.

    mu, std : f32 (ndim,)    model parameters (shared across the batch)
    eps     : f32 (B, ndim)  standard-normal draws (one row per forward pass)
    returns : (samples (B, ndim) f32, mean_logp (B,) f32)
    """
    ndim = mu.shape[0]
    batch = eps.shape[0]

    mu2 = jnp.asarray(mu, jnp.float32).reshape(1, ndim)
    std2 = jnp.asarray(std, jnp.float32).reshape(1, ndim)
    eps = jnp.asarray(eps, jnp.float32)

    if tb is None:
        # Aim for ~4 MiB f32 per eps/sample block: big DMAs, but small enough
        # that double-buffered blocks fit easily even on v7x's 64 MiB VMEM.
        vmem_rows = max(8, (4 * 1024 * 1024) // (ndim * 4))
        tb = batch if batch <= vmem_rows else (vmem_rows // 8) * 8
    tb = max(1, min(int(tb), batch))

    num_blocks = pl.cdiv(batch, tb)
    padded_b = num_blocks * tb
    if padded_b != batch:
        eps = jnp.pad(eps, ((0, padded_b - batch), (0, 0)))

    samples, msum = pl.pallas_call(
        functools.partial(_gaussian_fwd_kernel, 0.5 / ndim),
        out_shape=(
            jax.ShapeDtypeStruct((padded_b, ndim), jnp.float32),
            jax.ShapeDtypeStruct((num_blocks, tb), jnp.float32),
        ),
        grid=(num_blocks,),
        in_specs=[
            pl.BlockSpec((tb, ndim), lambda g: (g, 0)),   # eps
            pl.BlockSpec((1, ndim), lambda g: (0, 0)),    # mu   (resident)
            pl.BlockSpec((1, ndim), lambda g: (0, 0)),    # std  (resident)
        ],
        out_specs=(
            pl.BlockSpec((tb, ndim), lambda g: (g, 0)),   # samples
            pl.BlockSpec((None, tb), lambda g: (g, 0)),   # per-row logp part
        ),
        compiler_params=pltpu.CompilerParams(
            dimension_semantics=("parallel",),
        ),
    )(eps, mu2, std2)

    # Eps-independent part of mean(log_prob): -mean(log std) - 0.5*log(2*pi).
    const = (-jnp.mean(jnp.log(jnp.asarray(std, jnp.float32)))
             - 0.5 * math.log(2.0 * math.pi))
    means = msum.reshape(padded_b) + const

    if padded_b != batch:
        samples = samples[:batch]
        means = means[:batch]
    return samples, means


def gaussian_model_forward(mu, std, key):
    """Single GaussianModel.forward(): returns (sample (ndim,), mean_logp ())."""
    ndim = mu.shape[0]
    eps = jax.random.normal(key, (1, ndim), dtype=jnp.float32)
    samples, means = gaussian_model_forward_batched(mu, std, eps)
    return samples[0], means[0]


# TODO(synk): flattened_grad / unflatten_grad are host-side parameter/gradient
# bookkeeping with no forward-pass compute; not implemented as kernels.


if __name__ == "__main__":
    ndim = 256
    mu0 = 1.0

    # Mirrors GaussianModel.__init__(ndim, mu0=1.0): mu = mu0*ones, std = 0.1*ones.
    mu = jnp.full((ndim,), mu0, dtype=jnp.float32)
    std = jnp.full((ndim,), 0.1, dtype=jnp.float32)

    key = jax.random.PRNGKey(0)
    k1, k2, k3 = jax.random.split(key, 3)

    def ref_mean_logp(s, m, sd):
        lp = (-((s - m) ** 2) / (2.0 * sd * sd)
              - jnp.log(sd) - 0.5 * jnp.log(2.0 * jnp.pi))
        return jnp.mean(lp)

    # Single forward pass.
    sample, mean_logp = gaussian_model_forward(mu, std, k1)
    jax.block_until_ready((sample, mean_logp))
    assert sample.shape == (ndim,)
    assert mean_logp.shape == ()
    assert bool(jnp.all(jnp.isfinite(sample)))
    assert jnp.allclose(mean_logp, ref_mean_logp(sample, mu, std),
                        atol=1e-3, rtol=1e-3)
    assert abs(float(jnp.mean(sample)) - mu0) < 0.05       # sample ~ N(mu0, 0.1)
    assert 0.05 < float(jnp.std(sample)) < 0.2

    # Non-multiple-of-128 ndim exercises the unaligned last-dim path.
    ndim2 = 200
    mu_s = jnp.full((ndim2,), mu0, dtype=jnp.float32)
    std_s = jnp.full((ndim2,), 0.1, dtype=jnp.float32)
    s2, m2 = gaussian_model_forward(mu_s, std_s, k2)
    jax.block_until_ready((s2, m2))
    assert s2.shape == (ndim2,)
    assert jnp.allclose(m2, ref_mean_logp(s2, mu_s, std_s), atol=1e-3, rtol=1e-3)

    # Batched: 24 independent forward passes, tb=8 -> 3 grid steps (multi-block path).
    B = 24
    eps = jax.random.normal(k3, (B, ndim), dtype=jnp.float32)
    samples, means = gaussian_model_forward_batched(mu, std, eps, tb=8)
    jax.block_until_ready((samples, means))
    assert samples.shape == (B, ndim) and means.shape == (B,)
    for i in range(0, B, 7):
        assert jnp.allclose(means[i], ref_mean_logp(samples[i], mu, std),
                            atol=1e-3, rtol=1e-3)
    assert not bool(jnp.allclose(samples[0], samples[1]))   # distinct draws

    print("KERNEL_OK")
</pallas_src>

<mosaic_0001>
module attributes {stable_mosaic.version = 11 : i64} {
  func.func @_gaussian_fwd_kernel(%arg0: i32, %arg1: memref<1x256xf32, #tpu.memory_space<vmem>>, %arg2: memref<1x256xf32, #tpu.memory_space<vmem>>, %arg3: memref<1x256xf32, #tpu.memory_space<vmem>>, %arg4: memref<1x256xf32, #tpu.memory_space<vmem>>, %arg5: memref<1x1xf32, #tpu.memory_space<vmem>>) attributes {dimension_semantics = [#tpu.dimension_semantics<parallel>], iteration_bounds = array<i64: 1>, scalar_prefetch = 0 : i64, scratch_operands = 0 : i64, tpu.core_type = #tpu.core_type<tc>, window_params = [{transform_indices = @transform_0, window_bounds = array<i64: 1, 256>}, {pipeline_mode = #tpu.pipeline_mode<synchronous>, transform_indices = @transform_1, window_bounds = array<i64: 1, 256>}, {pipeline_mode = #tpu.pipeline_mode<synchronous>, transform_indices = @transform_2, window_bounds = array<i64: 1, 256>}, {transform_indices = @transform_3, window_bounds = array<i64: 1, 256>}, {transform_indices = @transform_4, window_bounds = array<i64: 1, 1>}]} {
    %c0 = arith.constant 0 : index
    %c0_0 = arith.constant 0 : index
    %0 = vector.load %arg1[%c0, %c0_0] : memref<1x256xf32, #tpu.memory_space<vmem>>, vector<1x256xf32>
    %c0_1 = arith.constant 0 : index
    %c0_2 = arith.constant 0 : index
    %1 = vector.load %arg2[%c0_1, %c0_2] : memref<1x256xf32, #tpu.memory_space<vmem>>, vector<1x256xf32>
    %c0_3 = arith.constant 0 : index
    %c0_4 = arith.constant 0 : index
    %2 = vector.load %arg3[%c0_3, %c0_4] : memref<1x256xf32, #tpu.memory_space<vmem>>, vector<1x256xf32>
    %3 = arith.mulf %2, %0 : vector<1x256xf32>
    %4 = arith.addf %1, %3 : vector<1x256xf32>
    %c0_5 = arith.constant 0 : index
    %c0_6 = arith.constant 0 : index
    %5 = vector.load %arg4[%c0_5, %c0_6] : memref<1x256xf32, #tpu.memory_space<vmem>>, vector<1x256xf32>
    tpu.vector_store %arg4[%c0_5, %c0_6], %4 {strides = array<i32>} : memref<1x256xf32, #tpu.memory_space<vmem>>, vector<1x256xf32>,
    %6 = arith.mulf %0, %0 : vector<1x256xf32>
    %cst = arith.constant dense<0.000000e+00> : vector<1xf32>
    %7 = vector.multi_reduction <add>, %6, %cst [1] : vector<1x256xf32> to vector<1xf32>
    %cst_7 = arith.constant -0.001953125 : f32
    %8 = vector.broadcast %cst_7 : f32 to vector<1xf32>
    %9 = arith.mulf %8, %7 : vector<1xf32>
    %c0_8 = arith.constant 0 : index
    %c0_9 = arith.constant 0 : index
    %10 = vector.load %arg5[%c0_8, %c0_9] : memref<1x1xf32, #tpu.memory_space<vmem>>, vector<1x1xf32>
    %11 = vector.shape_cast %10 : vector<1x1xf32> to vector<1xf32>
    %12 = vector.shape_cast %9 : vector<1xf32> to vector<1x1xf32>
    tpu.vector_store %arg5[%c0_8, %c0_9], %12 {strides = array<i32>} : memref<1x1xf32, #tpu.memory_space<vmem>>, vector<1x1xf32>,
    return
  }
  func.func @transform_0(%arg0: i32) -> (i32, i32) {
    %c0_i32 = arith.constant 0 : i32
    %c0_i32_0 = arith.constant 0 : i32
    return %arg0, %c0_i32 : i32, i32
  }
  func.func @transform_1(%arg0: i32) -> (i32, i32) {
    %c0_i32 = arith.constant 0 : i32
    %c0_i32_0 = arith.constant 0 : i32
    %c0_i32_1 = arith.constant 0 : i32
    return %c0_i32, %c0_i32_0 : i32, i32
  }
  func.func @transform_2(%arg0: i32) -> (i32, i32) {
    %c0_i32 = arith.constant 0 : i32
    %c0_i32_0 = arith.constant 0 : i32
    %c0_i32_1 = arith.constant 0 : i32
    return %c0_i32, %c0_i32_0 : i32, i32
  }
  func.func @transform_3(%arg0: i32) -> (i32, i32) {
    %c0_i32 = arith.constant 0 : i32
    %c0_i32_0 = arith.constant 0 : i32
    return %arg0, %c0_i32 : i32, i32
  }
  func.func @transform_4(%arg0: i32) -> (i32, i32) {
    %c0_i32 = arith.constant 0 : i32
    %c0_i32_0 = arith.constant 0 : i32
    return %arg0, %c0_i32 : i32, i32
  }
}

</mosaic_0001>

<llo_original>
// kernel: tpu_custom_call.1
$region0: #{tpu_custom_call.1}
  #allocation0 [shape = 'u32[]', space=smem, size = 0x4, offset = 0x4, fixed_abs, tag = 'smem constant byte address 0x4 - core index']
  #allocation1 [shape = 'u32[144,128]{1,0:T(1,128)}', space=vmem, size = 0x12000, scoped, tag = 'internal scratch']
  %s0 = inlined_call_operand.hbm [shape: f32[1,256], index: 0, kind: input, shape index: {}]
  %s1 = inlined_call_operand.vmem [shape: f32[1,256], index: 1, kind: input, shape index: {}]
  %s2 = inlined_call_operand.vmem [shape: f32[1,256], index: 2, kind: input, shape index: {}]
  %s3 = inlined_call_operand.hbm [shape: f32[1,256], index: 3, kind: output, shape index: {0}]
  %s4 = inlined_call_operand.hbm [shape: f32[1,1], index: 4, kind: output, shape index: {1}]
  %5 = xla_tuple %s3, %s4
  %s6 = sld [smem:[#allocation0]]
  $region34: #{tpu_custom_call.1} parent=0
    _
  %s8 = ssub.s32 1, %s6
  %s9 = scalar_select 0, %s8, %s6
  $region1: #{tpu_custom_call.1} parent=0
    #allocation2 [shape = 'u8[1024]{0}', space=vmem, size = 0x400, scoped, tag = 'input window, operand 0, single buffered']
    #allocation3 [shape = 's32[1]{0}', space=sflag, size = 0x4, scoped, tag = 'scoped memory for tpu_custom_call.1']
    #allocation4 [shape = 's32[1]{0}', space=sflag, size = 0x4, scoped, tag = 'scoped memory for tpu_custom_call.1']
    #allocation5 [shape = 'u8[1024]{0}', space=vmem, size = 0x400, scoped, tag = 'output window, operand 0, single buffered']
    #allocation6 [shape = 'u8[512]{0}', space=vmem, size = 0x400, scoped, tag = 'output window, operand 1, single buffered']
    #allocation7 [shape = 's32[1]{0}', space=sflag, size = 0x4, scoped, tag = 'scoped memory for tpu_custom_call.1']
    %10 = vsyncpa [#allocation3], 0
    %11 = vsyncpa [#allocation4], 0
    %12 = vsyncpa [#allocation7], 0
    // Predicated region
    $region2: #{tpu_custom_call.1} parent=1 // pred_check
      _
    $region3: #{tpu_custom_call.1} parent=1 // pred_check_branch
      %14 = sbr.rel (0) target = $region5
    $region4: #{tpu_custom_call.1} parent=1 // pred_region
      %s16 = ssub.s32 32, 32
      %17 = vsyncadd [#allocation3], %s16
      %s19 = sshll.u32 [#allocation2], 4
      %s20 = int_to_ptr.vmem [resolvable:$true] %s19
      %22 = dma.hbm_to_vmem [thread:$0]  %s0, 32, %s20, [#allocation3]
    $region5: #{tpu_custom_call.1} parent=1 // pred_fallthru
      _
    // Predicated region
    $region6: #{tpu_custom_call.1} parent=1 // pred_check
      _
    $region7: #{tpu_custom_call.1} parent=1 // pred_check_branch
      %24 = sbr.rel (0) target = $region9
    $region8: #{tpu_custom_call.1} parent=1 // pred_region
      _
    $region9: #{tpu_custom_call.1} parent=1 // pred_fallthru
      _
    // Predicated region
    $region10: #{tpu_custom_call.1} parent=1 // pred_check
      _
    $region11: #{tpu_custom_call.1} parent=1 // pred_check_branch
      %26 = sbr.rel (0) target = $region13
    $region12: #{tpu_custom_call.1} parent=1 // pred_region
      _
    $region13: #{tpu_custom_call.1} parent=1 // pred_fallthru
      _
    // Predicated region
    $region14: #{tpu_custom_call.1} parent=1 // pred_check
      _
    $region15: #{tpu_custom_call.1} parent=1 // pred_check_branch
      %28 = sbr.rel (0) target = $region17
    $region16: #{tpu_custom_call.1} parent=1 // pred_region
      %29 = dma.done [#allocation3], 32
    $region17: #{tpu_custom_call.1} parent=1 // pred_fallthru
      _
    %v30 = vld [vmem:[#allocation2] sm:$0x3]
    %v31 = vld [vmem:[%s1] sm:$0x3]
    %v32 = vld [vmem:[%s2] sm:$0x3]
    %v33 = vmul.f32 %v32, %v30
    %v34 = vadd.f32 %v31, %v33
    %v35 = vlaneseq
    %vm36 = vcmp.ge.s32.totalorder %v35, 0
    %vm37 = vcmp.lt.s32.totalorder %v35, 256
    %vm38 = vmand %vm36, %vm37
    %39 = vst.msk [vmem:[#allocation5] sm:$0x3] %vm38, %v34
    %v40 = vmul.f32 %v30, %v30
    %v42 = vlaneseq
    %v43 = vshrl.u32 %v42, 7
    %v44 = vsub.s32 0, %v43
    %v45 = vrot.slane %v40, %v44
    %v46 = vlaneseq
    %v47 = vshrl.u32 %v46, 7
    %v48 = vsub.s32 1, %v47
    %v49 = vrot.slane %v40, %v48
    %vm52 = vcmask 1040384
    %v53 = vsel %vm52, %v45, 0.0
    %v54 = vsel %vm52, %v49, 0.0
    %v55 = vadd.f32 %v53, %v54
    %56 = vadd.xlane.f32.xlu0 %v55
    %v57 = vpop.xlane.xlu0 %56
    %v58 = vmul.f32 %v57, -0.001953125
    %vm59 = vcmask 0
    %60 = vst.msk [vmem:[#allocation6] sm:$0x1] %vm59, %v58
    // Predicated region
    $region18: #{tpu_custom_call.1} parent=1 // pred_check
      _
    $region19: #{tpu_custom_call.1} parent=1 // pred_check_branch
      %62 = sbr.rel (0) target = $region21
    $region20: #{tpu_custom_call.1} parent=1 // pred_region
      %s64 = ssub.s32 32, 32
      %65 = vsyncadd [#allocation4], %s64
      %s67 = sshll.u32 [#allocation5], 4
      %s68 = int_to_ptr.vmem [resolvable:$true] %s67
      %70 = dma.vmem_to_hbm [thread:$0]  %s68, 32, %s3, [#allocation4]
    $region21: #{tpu_custom_call.1} parent=1 // pred_fallthru
      _
    // Predicated region
    $region22: #{tpu_custom_call.1} parent=1 // pred_check
      _
    $region23: #{tpu_custom_call.1} parent=1 // pred_check_branch
      %72 = sbr.rel (0) target = $region25
    $region24: #{tpu_custom_call.1} parent=1 // pred_region
      %s74 = ssub.s32 16, 16
      %75 = vsyncadd [#allocation7], %s74
      %s77 = sshll.u32 [#allocation6], 4
      %s78 = int_to_ptr.vmem [resolvable:$true] %s77
      %80 = dma.vmem_to_hbm [thread:$0]  %s78, 16, %s4, [#allocation7]
    $region25: #{tpu_custom_call.1} parent=1 // pred_fallthru
      _
    // Predicated region
    $region26: #{tpu_custom_call.1} parent=1 // pred_check
      _
    $region27: #{tpu_custom_call.1} parent=1 // pred_check_branch
      %82 = sbr.rel (0) target = $region29
    $region28: #{tpu_custom_call.1} parent=1 // pred_region
      %83 = dma.done [#allocation4], 32
    $region29: #{tpu_custom_call.1} parent=1 // pred_fallthru
      _
    // Predicated region
    $region30: #{tpu_custom_call.1} parent=1 // pred_check
      _
    $region31: #{tpu_custom_call.1} parent=1 // pred_check_branch
      %85 = sbr.rel (0) target = $region33
    $region32: #{tpu_custom_call.1} parent=1 // pred_region
      %86 = dma.done [#allocation7], 16
    $region33: #{tpu_custom_call.1} parent=1 // pred_fallthru
      _
    %87 = vsyncpa [#allocation3], 1
    %88 = vsyncpa [#allocation4], 1
    %89 = vsyncpa [#allocation7], 1

</llo_original>
